<compile_context>
chip_gen: v7x
topology: tpu7x:2x2x1
jax: 0.10.0
libtpu: 0.0.40
codegen_flags: <defaults>
</compile_context>

<pallas_src>
import jax
import jax.numpy as jnp
import numpy as np
from jax.experimental import pallas as pl
from jax.experimental.pallas import tpu as pltpu

# Model hyper-parameters (small, consistent with the module's __init__ signature)
VOCAB_SIZE = 64
EMBED_DIM = 32
HIDDEN_DIM = 32
BATCH = 2
SEQ_LEN = 8
V_PAD = 128  # lane-dense padded output width for the fc layer


def rnn_fc_kernel(tok_ref, emb_ref, w_ih_ref, w_hh_ref, b_ref, w_fc_ref, b_fc_ref,
                  out_ref, proj_ref):
    """Embedding gather + full RNN recurrence + final Linear in one kernel.

    tok_ref : (B, T)     int32 token ids (SMEM)
    emb_ref : (V, E)     embedding table (VMEM)
    w_ih_ref: (E, H)     input-to-hidden weight (transposed vs. PyTorch)
    w_hh_ref: (H, H)     hidden-to-hidden weight (transposed)
    b_ref   : (1, H)     combined bias b_ih + b_hh
    w_fc_ref: (H, Vp)    fc weight (transposed, zero-padded to Vp=128 lanes)
    b_fc_ref: (1, Vp)    fc bias (zero-padded)
    out_ref : (B, Vp)    padded logits
    proj_ref: (V, H)     scratch: projected embedding table
    """
    B = out_ref.shape[0]
    T = tok_ref.shape[1]

    # Hoisted input projection fused with the embedding table:
    #   proj[v] = emb[v] @ W_ih + (b_ih + b_hh)
    proj_ref[...] = (jnp.dot(emb_ref[...], w_ih_ref[...],
                             preferred_element_type=jnp.float32)
                     + b_ref[...])

    # Hoist the recurrent weight into vregs once (tiny: 32x32 f32).
    w_hh = w_hh_ref[...]

    def gather_x(t):
        # Gather the B projected rows for timestep t (off the h-dependency chain).
        rows = [proj_ref[pl.ds(tok_ref[b, t], 1), :] for b in range(B)]
        return rows[0] if B == 1 else jnp.concatenate(rows, axis=0)  # (B, H)

    # Recurrence, fully unrolled; h carried in vregs.  h_0 = 0, so step 0 is just tanh(x_0).
    h = jnp.tanh(gather_x(0))
    for t in range(1, T):
        x_t = gather_x(t)
        h = jnp.tanh(jnp.dot(h, w_hh, preferred_element_type=jnp.float32) + x_t)

    # fc(hidden.squeeze(0)) -> lane-dense (B, 128) store.
    out_ref[...] = (jnp.dot(h, w_fc_ref[...], preferred_element_type=jnp.float32)
                    + b_fc_ref[...])


@jax.jit
def sentence_completion_forward(tokens, params):
    """tokens: (B, T) int32 token ids. Returns (B, VOCAB_SIZE) float32 logits."""
    emb_table, w_ih, w_hh, b_ih, b_hh, w_fc, b_fc = params
    B = tokens.shape[0]

    b_comb = (b_ih + b_hh).reshape(1, HIDDEN_DIM)
    # Pad fc weights to a 128-lane output so the final store is unmasked.
    w_fc_pad = jnp.zeros((HIDDEN_DIM, V_PAD), jnp.float32).at[:, :VOCAB_SIZE].set(w_fc)
    b_fc_pad = jnp.zeros((1, V_PAD), jnp.float32).at[:, :VOCAB_SIZE].set(b_fc)

    smem_spec = pl.BlockSpec(memory_space=pltpu.MemorySpace.SMEM)
    vmem_spec = pl.BlockSpec(memory_space=pltpu.MemorySpace.VMEM)

    out_pad = pl.pallas_call(
        rnn_fc_kernel,
        out_shape=jax.ShapeDtypeStruct((B, V_PAD), jnp.float32),
        in_specs=[smem_spec] + [vmem_spec] * 6,
        out_specs=vmem_spec,
        scratch_shapes=[pltpu.VMEM((VOCAB_SIZE, HIDDEN_DIM), jnp.float32)],
    )(tokens, emb_table, w_ih, w_hh, b_comb, w_fc_pad, b_fc_pad)

    return out_pad[:, :VOCAB_SIZE]


def ref_forward(tokens, params):
    """Pure-JAX reference mirroring the PyTorch forward."""
    emb_table, w_ih, w_hh, b_ih, b_hh, w_fc, b_fc = params
    x = jnp.take(emb_table, tokens, axis=0)          # (B, T, E)
    h = jnp.zeros((tokens.shape[0], HIDDEN_DIM), jnp.float32)
    for t in range(tokens.shape[1]):
        h = jnp.tanh(x[:, t, :] @ w_ih + h @ w_hh + b_ih + b_hh)
    return h @ w_fc + b_fc


def init_params(key):
    """Deterministic parameter init (uniform, same ranges as PyTorch defaults)."""
    ks = jax.random.split(key, 7)
    k_rnn = 1.0 / np.sqrt(HIDDEN_DIM)
    k_fc = 1.0 / np.sqrt(HIDDEN_DIM)
    emb_table = jax.random.normal(ks[0], (VOCAB_SIZE, EMBED_DIM), jnp.float32)
    # Stored already transposed relative to PyTorch (in_dim, out_dim).
    w_ih = jax.random.uniform(ks[1], (EMBED_DIM, HIDDEN_DIM), jnp.float32, -k_rnn, k_rnn)
    w_hh = jax.random.uniform(ks[2], (HIDDEN_DIM, HIDDEN_DIM), jnp.float32, -k_rnn, k_rnn)
    b_ih = jax.random.uniform(ks[3], (HIDDEN_DIM,), jnp.float32, -k_rnn, k_rnn)
    b_hh = jax.random.uniform(ks[4], (HIDDEN_DIM,), jnp.float32, -k_rnn, k_rnn)
    w_fc = jax.random.uniform(ks[5], (HIDDEN_DIM, VOCAB_SIZE), jnp.float32, -k_fc, k_fc)
    b_fc = jax.random.uniform(ks[6], (VOCAB_SIZE,), jnp.float32, -k_fc, k_fc)
    return (emb_table, w_ih, w_hh, b_ih, b_hh, w_fc, b_fc)


if __name__ == "__main__":
    key = jax.random.PRNGKey(0)
    k_tok, k_par = jax.random.split(key)
    tokens = jax.random.randint(k_tok, (BATCH, SEQ_LEN), 0, VOCAB_SIZE, jnp.int32)
    params = init_params(k_par)

    logits = sentence_completion_forward(tokens, params)
    logits = jax.block_until_ready(logits)

    expected = ref_forward(tokens, params)
    np.testing.assert_allclose(np.asarray(logits), np.asarray(expected),
                               rtol=1e-5, atol=1e-5)
    assert logits.shape == (BATCH, VOCAB_SIZE)
    print("KERNEL_OK")
</pallas_src>

<mosaic_0001>
module attributes {stable_mosaic.version = 11 : i64} {
  func.func @rnn_fc_kernel(%arg0: memref<2x8xi32, #tpu.memory_space<smem>>, %arg1: memref<64x32xf32, #tpu.memory_space<vmem>>, %arg2: memref<32x32xf32, #tpu.memory_space<vmem>>, %arg3: memref<32x32xf32, #tpu.memory_space<vmem>>, %arg4: memref<1x32xf32, #tpu.memory_space<vmem>>, %arg5: memref<32x128xf32, #tpu.memory_space<vmem>>, %arg6: memref<1x128xf32, #tpu.memory_space<vmem>>, %arg7: memref<2x128xf32, #tpu.memory_space<vmem>>, %arg8: memref<64x32xf32, #tpu.memory_space<vmem>>) attributes {dimension_semantics = [], scalar_prefetch = 0 : i64, scratch_operands = 1 : i64, tpu.core_type = #tpu.core_type<tc>} {
    %c0 = arith.constant 0 : index
    %c0_0 = arith.constant 0 : index
    %0 = vector.load %arg1[%c0, %c0_0] : memref<64x32xf32, #tpu.memory_space<vmem>>, vector<64x32xf32>
    %c0_1 = arith.constant 0 : index
    %c0_2 = arith.constant 0 : index
    %1 = vector.load %arg2[%c0_1, %c0_2] : memref<32x32xf32, #tpu.memory_space<vmem>>, vector<32x32xf32>
    %cst = arith.constant dense<0.000000e+00> : vector<64x32xf32>
    %2 = tpu.matmul %0, %1, %cst {dimension_numbers = #tpu.dot_dimension_numbers<[1], [0], [0], [1], [0, 0, 1, 1], [], []>} : vector<64x32xf32>, vector<32x32xf32>, vector<64x32xf32> -> vector<64x32xf32>
    %c0_3 = arith.constant 0 : index
    %c0_4 = arith.constant 0 : index
    %3 = vector.load %arg4[%c0_3, %c0_4] : memref<1x32xf32, #tpu.memory_space<vmem>>, vector<1x32xf32>
    %4 = vector.broadcast %3 : vector<1x32xf32> to vector<64x32xf32>
    %5 = arith.addf %2, %4 : vector<64x32xf32>
    %c0_5 = arith.constant 0 : index
    %c0_6 = arith.constant 0 : index
    %6 = vector.load %arg8[%c0_5, %c0_6] : memref<64x32xf32, #tpu.memory_space<vmem>>, vector<64x32xf32>
    tpu.vector_store %arg8[%c0_5, %c0_6], %5 {strides = array<i32>} : memref<64x32xf32, #tpu.memory_space<vmem>>, vector<64x32xf32>,
    %c0_7 = arith.constant 0 : index
    %c0_8 = arith.constant 0 : index
    %7 = vector.load %arg3[%c0_7, %c0_8] : memref<32x32xf32, #tpu.memory_space<vmem>>, vector<32x32xf32>
    %c0_9 = arith.constant 0 : index
    %c0_10 = arith.constant 0 : index
    %8 = memref.load %arg0[%c0_9, %c0_10] : memref<2x8xi32, #tpu.memory_space<smem>>
    %9 = arith.index_cast %8 : i32 to index
    %c0_11 = arith.constant 0 : index
    %10 = vector.load %arg8[%9, %c0_11] : memref<64x32xf32, #tpu.memory_space<vmem>>, vector<1x32xf32>
    %c1 = arith.constant 1 : index
    %c0_12 = arith.constant 0 : index
    %11 = memref.load %arg0[%c1, %c0_12] : memref<2x8xi32, #tpu.memory_space<smem>>
    %12 = arith.index_cast %11 : i32 to index
    %c0_13 = arith.constant 0 : index
    %13 = vector.load %arg8[%12, %c0_13] : memref<64x32xf32, #tpu.memory_space<vmem>>, vector<1x32xf32>
    %14 = tpu.concatenate %10, %13 in 0 : vector<1x32xf32>, vector<1x32xf32> -> vector<2x32xf32>
    %15 = math.tanh %14 : vector<2x32xf32>
    %c0_14 = arith.constant 0 : index
    %c1_15 = arith.constant 1 : index
    %16 = memref.load %arg0[%c0_14, %c1_15] : memref<2x8xi32, #tpu.memory_space<smem>>
    %17 = arith.index_cast %16 : i32 to index
    %c0_16 = arith.constant 0 : index
    %18 = vector.load %arg8[%17, %c0_16] : memref<64x32xf32, #tpu.memory_space<vmem>>, vector<1x32xf32>
    %c1_17 = arith.constant 1 : index
    %c1_18 = arith.constant 1 : index
    %19 = memref.load %arg0[%c1_17, %c1_18] : memref<2x8xi32, #tpu.memory_space<smem>>
    %20 = arith.index_cast %19 : i32 to index
    %c0_19 = arith.constant 0 : index
    %21 = vector.load %arg8[%20, %c0_19] : memref<64x32xf32, #tpu.memory_space<vmem>>, vector<1x32xf32>
    %22 = tpu.concatenate %18, %21 in 0 : vector<1x32xf32>, vector<1x32xf32> -> vector<2x32xf32>
    %cst_20 = arith.constant dense<0.000000e+00> : vector<2x32xf32>
    %23 = tpu.matmul %15, %7, %cst_20 {dimension_numbers = #tpu.dot_dimension_numbers<[1], [0], [0], [1], [0, 0, 1, 1], [], []>} : vector<2x32xf32>, vector<32x32xf32>, vector<2x32xf32> -> vector<2x32xf32>
    %24 = arith.addf %23, %22 : vector<2x32xf32>
    %25 = math.tanh %24 : vector<2x32xf32>
    %c0_21 = arith.constant 0 : index
    %c2 = arith.constant 2 : index
    %26 = memref.load %arg0[%c0_21, %c2] : memref<2x8xi32, #tpu.memory_space<smem>>
    %27 = arith.index_cast %26 : i32 to index
    %c0_22 = arith.constant 0 : index
    %28 = vector.load %arg8[%27, %c0_22] : memref<64x32xf32, #tpu.memory_space<vmem>>, vector<1x32xf32>
    %c1_23 = arith.constant 1 : index
    %c2_24 = arith.constant 2 : index
    %29 = memref.load %arg0[%c1_23, %c2_24] : memref<2x8xi32, #tpu.memory_space<smem>>
    %30 = arith.index_cast %29 : i32 to index
    %c0_25 = arith.constant 0 : index
    %31 = vector.load %arg8[%30, %c0_25] : memref<64x32xf32, #tpu.memory_space<vmem>>, vector<1x32xf32>
    %32 = tpu.concatenate %28, %31 in 0 : vector<1x32xf32>, vector<1x32xf32> -> vector<2x32xf32>
    %cst_26 = arith.constant dense<0.000000e+00> : vector<2x32xf32>
    %33 = tpu.matmul %25, %7, %cst_26 {dimension_numbers = #tpu.dot_dimension_numbers<[1], [0], [0], [1], [0, 0, 1, 1], [], []>} : vector<2x32xf32>, vector<32x32xf32>, vector<2x32xf32> -> vector<2x32xf32>
    %34 = arith.addf %33, %32 : vector<2x32xf32>
    %35 = math.tanh %34 : vector<2x32xf32>
    %c0_27 = arith.constant 0 : index
    %c3 = arith.constant 3 : index
    %36 = memref.load %arg0[%c0_27, %c3] : memref<2x8xi32, #tpu.memory_space<smem>>
    %37 = arith.index_cast %36 : i32 to index
    %c0_28 = arith.constant 0 : index
    %38 = vector.load %arg8[%37, %c0_28] : memref<64x32xf32, #tpu.memory_space<vmem>>, vector<1x32xf32>
    %c1_29 = arith.constant 1 : index
    %c3_30 = arith.constant 3 : index
    %39 = memref.load %arg0[%c1_29, %c3_30] : memref<2x8xi32, #tpu.memory_space<smem>>
    %40 = arith.index_cast %39 : i32 to index
    %c0_31 = arith.constant 0 : index
    %41 = vector.load %arg8[%40, %c0_31] : memref<64x32xf32, #tpu.memory_space<vmem>>, vector<1x32xf32>
    %42 = tpu.concatenate %38, %41 in 0 : vector<1x32xf32>, vector<1x32xf32> -> vector<2x32xf32>
    %cst_32 = arith.constant dense<0.000000e+00> : vector<2x32xf32>
    %43 = tpu.matmul %35, %7, %cst_32 {dimension_numbers = #tpu.dot_dimension_numbers<[1], [0], [0], [1], [0, 0, 1, 1], [], []>} : vector<2x32xf32>, vector<32x32xf32>, vector<2x32xf32> -> vector<2x32xf32>
    %44 = arith.addf %43, %42 : vector<2x32xf32>
    %45 = math.tanh %44 : vector<2x32xf32>
    %c0_33 = arith.constant 0 : index
    %c4 = arith.constant 4 : index
    %46 = memref.load %arg0[%c0_33, %c4] : memref<2x8xi32, #tpu.memory_space<smem>>
    %47 = arith.index_cast %46 : i32 to index
    %c0_34 = arith.constant 0 : index
    %48 = vector.load %arg8[%47, %c0_34] : memref<64x32xf32, #tpu.memory_space<vmem>>, vector<1x32xf32>
    %c1_35 = arith.constant 1 : index
    %c4_36 = arith.constant 4 : index
    %49 = memref.load %arg0[%c1_35, %c4_36] : memref<2x8xi32, #tpu.memory_space<smem>>
    %50 = arith.index_cast %49 : i32 to index
    %c0_37 = arith.constant 0 : index
    %51 = vector.load %arg8[%50, %c0_37] : memref<64x32xf32, #tpu.memory_space<vmem>>, vector<1x32xf32>
    %52 = tpu.concatenate %48, %51 in 0 : vector<1x32xf32>, vector<1x32xf32> -> vector<2x32xf32>
    %cst_38 = arith.constant dense<0.000000e+00> : vector<2x32xf32>
    %53 = tpu.matmul %45, %7, %cst_38 {dimension_numbers = #tpu.dot_dimension_numbers<[1], [0], [0], [1], [0, 0, 1, 1], [], []>} : vector<2x32xf32>, vector<32x32xf32>, vector<2x32xf32> -> vector<2x32xf32>
    %54 = arith.addf %53, %52 : vector<2x32xf32>
    %55 = math.tanh %54 : vector<2x32xf32>
    %c0_39 = arith.constant 0 : index
    %c5 = arith.constant 5 : index
    %56 = memref.load %arg0[%c0_39, %c5] : memref<2x8xi32, #tpu.memory_space<smem>>
    %57 = arith.index_cast %56 : i32 to index
    %c0_40 = arith.constant 0 : index
    %58 = vector.load %arg8[%57, %c0_40] : memref<64x32xf32, #tpu.memory_space<vmem>>, vector<1x32xf32>
    %c1_41 = arith.constant 1 : index
    %c5_42 = arith.constant 5 : index
    %59 = memref.load %arg0[%c1_41, %c5_42] : memref<2x8xi32, #tpu.memory_space<smem>>
    %60 = arith.index_cast %59 : i32 to index
    %c0_43 = arith.constant 0 : index
    %61 = vector.load %arg8[%60, %c0_43] : memref<64x32xf32, #tpu.memory_space<vmem>>, vector<1x32xf32>
    %62 = tpu.concatenate %58, %61 in 0 : vector<1x32xf32>, vector<1x32xf32> -> vector<2x32xf32>
    %cst_44 = arith.constant dense<0.000000e+00> : vector<2x32xf32>
    %63 = tpu.matmul %55, %7, %cst_44 {dimension_numbers = #tpu.dot_dimension_numbers<[1], [0], [0], [1], [0, 0, 1, 1], [], []>} : vector<2x32xf32>, vector<32x32xf32>, vector<2x32xf32> -> vector<2x32xf32>
    %64 = arith.addf %63, %62 : vector<2x32xf32>
    %65 = math.tanh %64 : vector<2x32xf32>
    %c0_45 = arith.constant 0 : index
    %c6 = arith.constant 6 : index
    %66 = memref.load %arg0[%c0_45, %c6] : memref<2x8xi32, #tpu.memory_space<smem>>
    %67 = arith.index_cast %66 : i32 to index
    %c0_46 = arith.constant 0 : index
    %68 = vector.load %arg8[%67, %c0_46] : memref<64x32xf32, #tpu.memory_space<vmem>>, vector<1x32xf32>
    %c1_47 = arith.constant 1 : index
    %c6_48 = arith.constant 6 : index
    %69 = memref.load %arg0[%c1_47, %c6_48] : memref<2x8xi32, #tpu.memory_space<smem>>
    %70 = arith.index_cast %69 : i32 to index
    %c0_49 = arith.constant 0 : index
    %71 = vector.load %arg8[%70, %c0_49] : memref<64x32xf32, #tpu.memory_space<vmem>>, vector<1x32xf32>
    %72 = tpu.concatenate %68, %71 in 0 : vector<1x32xf32>, vector<1x32xf32> -> vector<2x32xf32>
    %cst_50 = arith.constant dense<0.000000e+00> : vector<2x32xf32>
    %73 = tpu.matmul %65, %7, %cst_50 {dimension_numbers = #tpu.dot_dimension_numbers<[1], [0], [0], [1], [0, 0, 1, 1], [], []>} : vector<2x32xf32>, vector<32x32xf32>, vector<2x32xf32> -> vector<2x32xf32>
    %74 = arith.addf %73, %72 : vector<2x32xf32>
    %75 = math.tanh %74 : vector<2x32xf32>
    %c0_51 = arith.constant 0 : index
    %c7 = arith.constant 7 : index
    %76 = memref.load %arg0[%c0_51, %c7] : memref<2x8xi32, #tpu.memory_space<smem>>
    %77 = arith.index_cast %76 : i32 to index
    %c0_52 = arith.constant 0 : index
    %78 = vector.load %arg8[%77, %c0_52] : memref<64x32xf32, #tpu.memory_space<vmem>>, vector<1x32xf32>
    %c1_53 = arith.constant 1 : index
    %c7_54 = arith.constant 7 : index
    %79 = memref.load %arg0[%c1_53, %c7_54] : memref<2x8xi32, #tpu.memory_space<smem>>
    %80 = arith.index_cast %79 : i32 to index
    %c0_55 = arith.constant 0 : index
    %81 = vector.load %arg8[%80, %c0_55] : memref<64x32xf32, #tpu.memory_space<vmem>>, vector<1x32xf32>
    %82 = tpu.concatenate %78, %81 in 0 : vector<1x32xf32>, vector<1x32xf32> -> vector<2x32xf32>
    %cst_56 = arith.constant dense<0.000000e+00> : vector<2x32xf32>
    %83 = tpu.matmul %75, %7, %cst_56 {dimension_numbers = #tpu.dot_dimension_numbers<[1], [0], [0], [1], [0, 0, 1, 1], [], []>} : vector<2x32xf32>, vector<32x32xf32>, vector<2x32xf32> -> vector<2x32xf32>
    %84 = arith.addf %83, %82 : vector<2x32xf32>
    %85 = math.tanh %84 : vector<2x32xf32>
    %c0_57 = arith.constant 0 : index
    %c0_58 = arith.constant 0 : index
    %86 = vector.load %arg5[%c0_57, %c0_58] : memref<32x128xf32, #tpu.memory_space<vmem>>, vector<32x128xf32>
    %cst_59 = arith.constant dense<0.000000e+00> : vector<2x128xf32>
    %87 = tpu.matmul %85, %86, %cst_59 {dimension_numbers = #tpu.dot_dimension_numbers<[1], [0], [0], [1], [0, 0, 1, 1], [], []>} : vector<2x32xf32>, vector<32x128xf32>, vector<2x128xf32> -> vector<2x128xf32>
    %c0_60 = arith.constant 0 : index
    %c0_61 = arith.constant 0 : index
    %88 = vector.load %arg6[%c0_60, %c0_61] : memref<1x128xf32, #tpu.memory_space<vmem>>, vector<1x128xf32>
    %89 = vector.broadcast %88 : vector<1x128xf32> to vector<2x128xf32>
    %90 = arith.addf %87, %89 : vector<2x128xf32>
    %c0_62 = arith.constant 0 : index
    %c0_63 = arith.constant 0 : index
    %91 = vector.load %arg7[%c0_62, %c0_63] : memref<2x128xf32, #tpu.memory_space<vmem>>, vector<2x128xf32>
    tpu.vector_store %arg7[%c0_62, %c0_63], %90 {strides = array<i32>} : memref<2x128xf32, #tpu.memory_space<vmem>>, vector<2x128xf32>,
    return
  }
}

</mosaic_0001>

<llo_original>
// kernel: sentence_completion_forward.1
$region0: #{sentence_completion_forward.1}
  #allocation0 [shape = 'u32[]', space=smem, size = 0x4, offset = 0x4, fixed_abs, tag = 'smem constant byte address 0x4 - core index']
  #allocation1 [shape = 'u32[144,128]{1,0:T(1,128)}', space=vmem, size = 0x12000, scoped, tag = 'internal scratch']
  #allocation2 [shape = 'f32[64,32]{1,0:T(8,128)}', space=vmem, size = 0x8000, scoped, tag = 'scratch operand']
  %s0 = inlined_call_operand.vmem [shape: s32[2,8], index: 0, kind: input, shape index: {}]
  %s1 = inlined_call_operand.vmem [shape: f32[64,32], index: 1, kind: input, shape index: {}]
  %s2 = inlined_call_operand.vmem [shape: f32[32,32], index: 2, kind: input, shape index: {}]
  %s3 = inlined_call_operand.vmem [shape: f32[32,32], index: 3, kind: input, shape index: {}]
  %s4 = inlined_call_operand.vmem [shape: f32[1,32], index: 4, kind: input, shape index: {}]
  %s5 = inlined_call_operand.vmem [shape: f32[32,128], index: 5, kind: input, shape index: {}]
  %s6 = inlined_call_operand.vmem [shape: f32[1,128], index: 6, kind: input, shape index: {}]
  %s7 = inlined_call_operand.hbm [shape: f32[2,128], index: 7, kind: output, shape index: {}]
  %s8 = sld [smem:[#allocation0]]
  $region42: #{sentence_completion_forward.1} parent=0
    _
  %s10 = ssub.s32 1, %s8
  %s11 = scalar_select 0, %s10, %s8
  $region1: #{sentence_completion_forward.1} parent=0
    #allocation3 [shape = 'u8[1024]{0}', space=smem, size = 0x400, scoped, tag = 'input window, operand 0, single buffered']
    #allocation4 [shape = 's32[1]{0}', space=sflag, size = 0x4, scoped, tag = 'scoped memory for sentence_completion_forward.1']
    #allocation5 [shape = 's32[1]{0}', space=sflag, size = 0x4, scoped, tag = 'scoped memory for sentence_completion_forward.1']
    #allocation6 [shape = 'u8[1024]{0}', space=vmem, size = 0x400, scoped, tag = 'output window, operand 0, single buffered']
    %12 = vsyncpa [#allocation5], 0
    %13 = vsyncpa [#allocation4], 0
    // Predicated region
    $region2: #{sentence_completion_forward.1} parent=1 // pred_check
      _
    $region3: #{sentence_completion_forward.1} parent=1 // pred_check_branch
      %15 = sbr.rel (0) target = $region5
    $region4: #{sentence_completion_forward.1} parent=1 // pred_region
      %s17 = ssub.s32 32, 32
      %18 = vsyncadd [#allocation5], %s17
      %s20 = sshll.u32 %s0, 4
      %s21 = int_to_ptr.vmem [resolvable:$true] %s20
      %23 = dma.vmem_to_smem %s21, 32, [#allocation3], [#allocation5]
    $region5: #{sentence_completion_forward.1} parent=1 // pred_fallthru
      _
    // Predicated region
    $region6: #{sentence_completion_forward.1} parent=1 // pred_check
      _
    $region7: #{sentence_completion_forward.1} parent=1 // pred_check_branch
      %25 = sbr.rel (0) target = $region9
    $region8: #{sentence_completion_forward.1} parent=1 // pred_region
      _
    $region9: #{sentence_completion_forward.1} parent=1 // pred_fallthru
      _
    // Predicated region
    $region10: #{sentence_completion_forward.1} parent=1 // pred_check
      _
    $region11: #{sentence_completion_forward.1} parent=1 // pred_check_branch
      %27 = sbr.rel (0) target = $region13
    $region12: #{sentence_completion_forward.1} parent=1 // pred_region
      _
    $region13: #{sentence_completion_forward.1} parent=1 // pred_fallthru
      _
    // Predicated region
    $region14: #{sentence_completion_forward.1} parent=1 // pred_check
      _
    $region15: #{sentence_completion_forward.1} parent=1 // pred_check_branch
      %29 = sbr.rel (0) target = $region17
    $region16: #{sentence_completion_forward.1} parent=1 // pred_region
      _
    $region17: #{sentence_completion_forward.1} parent=1 // pred_fallthru
      _
    // Predicated region
    $region18: #{sentence_completion_forward.1} parent=1 // pred_check
      _
    $region19: #{sentence_completion_forward.1} parent=1 // pred_check_branch
      %31 = sbr.rel (0) target = $region21
    $region20: #{sentence_completion_forward.1} parent=1 // pred_region
      _
    $region21: #{sentence_completion_forward.1} parent=1 // pred_fallthru
      _
    // Predicated region
    $region22: #{sentence_completion_forward.1} parent=1 // pred_check
      _
    $region23: #{sentence_completion_forward.1} parent=1 // pred_check_branch
      %33 = sbr.rel (0) target = $region25
    $region24: #{sentence_completion_forward.1} parent=1 // pred_region
      _
    $region25: #{sentence_completion_forward.1} parent=1 // pred_fallthru
      _
    // Predicated region
    $region26: #{sentence_completion_forward.1} parent=1 // pred_check
      _
    $region27: #{sentence_completion_forward.1} parent=1 // pred_check_branch
      %35 = sbr.rel (0) target = $region29
    $region28: #{sentence_completion_forward.1} parent=1 // pred_region
      _
    $region29: #{sentence_completion_forward.1} parent=1 // pred_fallthru
      _
    // Predicated region
    $region30: #{sentence_completion_forward.1} parent=1 // pred_check
      _
    $region31: #{sentence_completion_forward.1} parent=1 // pred_check_branch
      %37 = sbr.rel (0) target = $region33
    $region32: #{sentence_completion_forward.1} parent=1 // pred_region
      %38 = dma.done [#allocation5], 32
    $region33: #{sentence_completion_forward.1} parent=1 // pred_fallthru
      _
    %39 = sfence
    %v40 = vld [vmem:[%s1] sm:$0xff]
    %v41 = vld [vmem:[%s1 + $0x8] sm:$0xff]
    %v42 = vld [vmem:[%s1 + $0x10] sm:$0xff]
    %v43 = vld [vmem:[%s1 + $0x18] sm:$0xff]
    %v44 = vld [vmem:[%s1 + $0x20] sm:$0xff]
    %v45 = vld [vmem:[%s1 + $0x28] sm:$0xff]
    %v46 = vld [vmem:[%s1 + $0x30] sm:$0xff]
    %v47 = vld [vmem:[%s1 + $0x38] sm:$0xff]
    %v48 = vld [vmem:[%s2] sm:$0xff]
    %v49 = vld [vmem:[%s2 + $0x8] sm:$0xff]
    %v50 = vld [vmem:[%s2 + $0x10] sm:$0xff]
    %v51 = vld [vmem:[%s2 + $0x18] sm:$0xff]
    %v52 = vld [vmem:[%s4] sm:$0x1]
    %v54 = vlaneseq
    %v55 = vshrl.u32 %v54, 7
    %v56 = vsub.s32 0, %v55
    %v57 = vrot.slane %v52, %v56
    %vm59 = vcmask 261120
    %v61 = vsel %vm59, %v40, 0
    %v64 = vsel %vm59, %v41, 0
    %v67 = vsel %vm59, %v42, 0
    %v70 = vsel %vm59, %v43, 0
    %v73 = vsel %vm59, %v44, 0
    %v76 = vsel %vm59, %v45, 0
    %v79 = vsel %vm59, %v46, 0
    %v82 = vsel %vm59, %v47, 0
    %84 = vmatprep.subr.mxu0 0.0
    %85 = vmatpush1.msra.mxu0 %v48
    %86 = vmatprep.subr.mxu0 0.0
    %87 = vmatpush1.msra.mxu0 %v49
    %88 = vmatprep.subr.mxu0 0.0
    %89 = vmatpush1.msra.mxu0 %v50
    %90 = vmatprep.subr.mxu0 0.0
    %91 = vmatpush1.msra.mxu0 %v51
    %92 = vmatprep.subr.mxu0 0.0
    %93 = vmatpush1.msra.mxu0 0.0
    %94 = vmatprep.subr.mxu0 0.0
    %95 = vmatpush1.msra.mxu0 0.0
    %96 = vmatprep.subr.mxu0 0.0
    %97 = vmatpush1.msra.mxu0 0.0
    %98 = vmatprep.subr.mxu0 0.0
    %99 = vmatpush1.msra.mxu0 0.0
    %100 = vmatprep.subr.mxu0 0.0
    %101 = vmatpush1.msra.mxu0 0.0
    %102 = vmatprep.subr.mxu0 0.0
    %103 = vmatpush1.msra.mxu0 0.0
    %104 = vmatprep.subr.mxu0 0.0
    %105 = vmatpush1.msra.mxu0 0.0
    %106 = vmatprep.subr.mxu0 0.0
    %107 = vmatpush1.msra.mxu0 0.0
    %108 = vmatprep.subr.mxu0 0.0
    %109 = vmatpush1.msra.mxu0 0.0
    %110 = vmatprep.subr.mxu0 0.0
    %111 = vmatpush1.msra.mxu0 0.0
    %112 = vmatprep.subr.mxu0 0.0
    %113 = vmatpush1.msra.mxu0 0.0
    %114 = vmatprep.subr.mxu0 0.0
    %115 = vmatpush1.msra.mxu0 0.0
    %116 = vmatprep.subr.mxu0 0.0
    %117 = vmatpush1.msra.mxu0 0.0
    %118 = vmatprep.subr.mxu0 0.0
    %119 = vmatpush1.msra.mxu0 0.0
    %120 = vmatprep.subr.mxu0 0.0
    %121 = vmatpush1.msra.mxu0 0.0
    %122 = vmatprep.subr.mxu0 0.0
    %123 = vmatpush1.msra.mxu0 0.0
    %124 = vmatprep.subr.mxu0 0.0
    %125 = vmatpush1.msra.mxu0 0.0
    %126 = vmatprep.subr.mxu0 0.0
    %127 = vmatpush1.msra.mxu0 0.0
    %128 = vmatprep.subr.mxu0 0.0
    %129 = vmatpush1.msra.mxu0 0.0
    %130 = vmatprep.subr.mxu0 0.0
    %131 = vmatpush1.msra.mxu0 0.0
    %132 = vmatprep.subr.mxu0 0.0
    %133 = vmatpush1.msra.mxu0 0.0
    %134 = vmatprep.subr.mxu0 0.0
    %135 = vmatpush1.msra.mxu0 0.0
    %136 = vmatprep.subr.mxu0 0.0
    %137 = vmatpush1.msra.mxu0 0.0
    %138 = vmatprep.subr.mxu0 0.0
    %139 = vmatpush1.msra.mxu0 0.0
    %140 = vmatprep.subr.mxu0 0.0
    %141 = vmatpush1.msra.mxu0 0.0
    %142 = vmatprep.subr.mxu0 0.0
    %143 = vmatpush1.msra.mxu0 0.0
    %144 = vmatprep.subr.mxu0 0.0
    %145 = vmatpush1.msra.mxu0 0.0
    %146 = vmatprep.subr.mxu0 0.0
    %147 = vmatpush1.msra.mxu0 0.0
    %148 = vmatprep.mubr.f32.mxu0 0.0
    %149 = vmatmul.mubr.f32.gmra.mrb[0].mxu0 %v61
    %v150 = vpop.f32.mrb[0].mxu0
    %v151 = vadd.f32 %v57, %v150
    %v152 = vpop.f32.mrb[0].mxu0
    %153 = vmatprep.mubr.f32.mxu0 0.0
    %154 = vmatmul.mubr.f32.gmra.mrb[0].mxu0 %v64
    %v155 = vpop.f32.mrb[0].mxu0
    %v156 = vadd.f32 %v57, %v155
    %v157 = vpop.f32.mrb[0].mxu0
    %158 = vmatprep.mubr.f32.mxu0 0.0
    %159 = vmatmul.mubr.f32.gmra.mrb[0].mxu0 %v67
    %v160 = vpop.f32.mrb[0].mxu0
    %v161 = vadd.f32 %v57, %v160
    %v162 = vpop.f32.mrb[0].mxu0
    %163 = vmatprep.mubr.f32.mxu0 0.0
    %164 = vmatmul.mubr.f32.gmra.mrb[0].mxu0 %v70
    %v165 = vpop.f32.mrb[0].mxu0
    %v166 = vadd.f32 %v57, %v165
    %v167 = vpop.f32.mrb[0].mxu0
    %168 = vmatprep.mubr.f32.mxu0 0.0
    %169 = vmatmul.mubr.f32.gmra.mrb[0].mxu0 %v73
    %v170 = vpop.f32.mrb[0].mxu0
    %v171 = vadd.f32 %v57, %v170
    %v172 = vpop.f32.mrb[0].mxu0
    %173 = vmatprep.mubr.f32.mxu0 0.0
    %174 = vmatmul.mubr.f32.gmra.mrb[0].mxu0 %v76
    %v175 = vpop.f32.mrb[0].mxu0
    %v176 = vadd.f32 %v57, %v175
    %v177 = vpop.f32.mrb[0].mxu0
    %178 = vmatprep.mubr.f32.mxu0 0.0
    %179 = vmatmul.mubr.f32.gmra.mrb[0].mxu0 %v79
    %v180 = vpop.f32.mrb[0].mxu0
    %v181 = vadd.f32 %v57, %v180
    %v182 = vpop.f32.mrb[0].mxu0
    %183 = vmatprep.mubr.f32.mxu0 0.0
    %184 = vmatmul.mubr.f32.gmra.mrb[0].mxu0 %v82
    %v185 = vpop.f32.mrb[0].mxu0
    %v186 = vadd.f32 %v57, %v185
    %v187 = vpop.f32.mrb[0].mxu0
    %188 = vdwg.mxu0
    %189 = vst.msk [vmem:[#allocation2] sm:$0xff] %vm59, %v151
    %190 = vst.msk [vmem:[#allocation2 + $0x8] sm:$0xff] %vm59, %v156
    %191 = vst.msk [vmem:[#allocation2 + $0x10] sm:$0xff] %vm59, %v161
    %192 = vst.msk [vmem:[#allocation2 + $0x18] sm:$0xff] %vm59, %v166
    %193 = vst.msk [vmem:[#allocation2 + $0x20] sm:$0xff] %vm59, %v171
    %194 = vst.msk [vmem:[#allocation2 + $0x28] sm:$0xff] %vm59, %v176
    %195 = vst.msk [vmem:[#allocation2 + $0x30] sm:$0xff] %vm59, %v181
    %196 = vst.msk [vmem:[#allocation2 + $0x38] sm:$0xff] %vm59, %v186
    %v197 = vld [vmem:[%s3] sm:$0xff]
    %v198 = vld [vmem:[%s3 + $0x8] sm:$0xff]
    %v199 = vld [vmem:[%s3 + $0x10] sm:$0xff]
    %v200 = vld [vmem:[%s3 + $0x18] sm:$0xff]
    %s201 = sld [smem:[#allocation3]]
    %s202 = scalar_lea.vmem [#allocation2], %s201
    %v203 = vld [vmem:[%s202] sm:$0x1]
    %s204 = sld [smem:[#allocation3 + $0x80]]
    %s205 = scalar_lea.vmem [#allocation2], %s204
    %v206 = vld [vmem:[%s205] sm:$0x1]
    %v208 = vrot.slane %v206, 7
    %vm210 = vcmask 1040384
    %v211 = vsel %vm210, %v203, %v208
    %v212 = vtanh.pop %v211
    %s213 = sld [smem:[#allocation3 + $0x1]]
    %s214 = scalar_lea.vmem [#allocation2], %s213
    %v215 = vld [vmem:[%s214] sm:$0x1]
    %s216 = sld [smem:[#allocation3 + $0x81]]
    %s217 = scalar_lea.vmem [#allocation2], %s216
    %v218 = vld [vmem:[%s217] sm:$0x1]
    %v220 = vrot.slane %v218, 7
    %v222 = vsel %vm210, %v215, %v220
    %v224 = vsel %vm59, %v212, 0
    %226 = vmatprep.subr.mxu0 0.0
    %227 = vmatpush1.msra.mxu0 %v197
    %228 = vmatprep.subr.mxu0 0.0
    %229 = vmatpush1.msra.mxu0 %v198
    %230 = vmatprep.subr.mxu0 0.0
    %231 = vmatpush1.msra.mxu0 %v199
    %232 = vmatprep.subr.mxu0 0.0
    %233 = vmatpush1.msra.mxu0 %v200
    %234 = vmatprep.subr.mxu0 0.0
    %235 = vmatpush1.msra.mxu0 0.0
    %236 = vmatprep.subr.mxu0 0.0
    %237 = vmatpush1.msra.mxu0 0.0
    %238 = vmatprep.subr.mxu0 0.0
    %239 = vmatpush1.msra.mxu0 0.0
    %240 = vmatprep.subr.mxu0 0.0
    %241 = vmatpush1.msra.mxu0 0.0
    %242 = vmatprep.subr.mxu0 0.0
    %243 = vmatpush1.msra.mxu0 0.0
    %244 = vmatprep.subr.mxu0 0.0
    %245 = vmatpush1.msra.mxu0 0.0
    %246 = vmatprep.subr.mxu0 0.0
    %247 = vmatpush1.msra.mxu0 0.0
    %248 = vmatprep.subr.mxu0 0.0
    %249 = vmatpush1.msra.mxu0 0.0
    %250 = vmatprep.subr.mxu0 0.0
    %251 = vmatpush1.msra.mxu0 0.0
    %252 = vmatprep.subr.mxu0 0.0
    %253 = vmatpush1.msra.mxu0 0.0
    %254 = vmatprep.subr.mxu0 0.0
    %255 = vmatpush1.msra.mxu0 0.0
    %256 = vmatprep.subr.mxu0 0.0
    %257 = vmatpush1.msra.mxu0 0.0
    %258 = vmatprep.subr.mxu0 0.0
    %259 = vmatpush1.msra.mxu0 0.0
    %260 = vmatprep.subr.mxu0 0.0
    %261 = vmatpush1.msra.mxu0 0.0
    %262 = vmatprep.subr.mxu0 0.0
    %263 = vmatpush1.msra.mxu0 0.0
    %264 = vmatprep.subr.mxu0 0.0
    %265 = vmatpush1.msra.mxu0 0.0
    %266 = vmatprep.subr.mxu0 0.0
    %267 = vmatpush1.msra.mxu0 0.0
    %268 = vmatprep.subr.mxu0 0.0
    %269 = vmatpush1.msra.mxu0 0.0
    %270 = vmatprep.subr.mxu0 0.0
    %271 = vmatpush1.msra.mxu0 0.0
    %272 = vmatprep.subr.mxu0 0.0
    %273 = vmatpush1.msra.mxu0 0.0
    %274 = vmatprep.subr.mxu0 0.0
    %275 = vmatpush1.msra.mxu0 0.0
    %276 = vmatprep.subr.mxu0 0.0
    %277 = vmatpush1.msra.mxu0 0.0
    %278 = vmatprep.subr.mxu0 0.0
    %279 = vmatpush1.msra.mxu0 0.0
    %280 = vmatprep.subr.mxu0 0.0
    %281 = vmatpush1.msra.mxu0 0.0
    %282 = vmatprep.subr.mxu0 0.0
    %283 = vmatpush1.msra.mxu0 0.0
    %284 = vmatprep.subr.mxu0 0.0
    %285 = vmatpush1.msra.mxu0 0.0
    %286 = vmatprep.subr.mxu0 0.0
    %287 = vmatpush1.msra.mxu0 0.0
    %288 = vmatprep.subr.mxu0 0.0
    %289 = vmatpush1.msra.mxu0 0.0
    %290 = vmatprep.mubr.f32.mxu0 0.0
    %291 = vmatmul.mubr.f32.gmra.mrb[0].mxu0 %v224
    %v292 = vpop.f32.mrb[0].mxu0
    %v293 = vadd.f32 %v222, %v292
    %v294 = vpop.f32.mrb[0].mxu0
    %295 = vdwg.mxu0
    %v296 = vtanh.pop %v293
    %s297 = sld [smem:[#allocation3 + $0x2]]
    %s298 = scalar_lea.vmem [#allocation2], %s297
    %v299 = vld [vmem:[%s298] sm:$0x1]
    %s300 = sld [smem:[#allocation3 + $0x82]]
    %s301 = scalar_lea.vmem [#allocation2], %s300
    %v302 = vld [vmem:[%s301] sm:$0x1]
    %v304 = vrot.slane %v302, 7
    %v306 = vsel %vm210, %v299, %v304
    %v308 = vsel %vm59, %v296, 0
    %310 = vmatprep.subr.mxu0 0.0
    %311 = vmatpush1.msra.mxu0 %v197
    %312 = vmatprep.subr.mxu0 0.0
    %313 = vmatpush1.msra.mxu0 %v198
    %314 = vmatprep.subr.mxu0 0.0
    %315 = vmatpush1.msra.mxu0 %v199
    %316 = vmatprep.subr.mxu0 0.0
    %317 = vmatpush1.msra.mxu0 %v200
    %318 = vmatprep.subr.mxu0 0.0
    %319 = vmatpush1.msra.mxu0 0.0
    %320 = vmatprep.subr.mxu0 0.0
    %321 = vmatpush1.msra.mxu0 0.0
    %322 = vmatprep.subr.mxu0 0.0
    %323 = vmatpush1.msra.mxu0 0.0
    %324 = vmatprep.subr.mxu0 0.0
    %325 = vmatpush1.msra.mxu0 0.0
    %326 = vmatprep.subr.mxu0 0.0
    %327 = vmatpush1.msra.mxu0 0.0
    %328 = vmatprep.subr.mxu0 0.0
    %329 = vmatpush1.msra.mxu0 0.0
    %330 = vmatprep.subr.mxu0 0.0
    %331 = vmatpush1.msra.mxu0 0.0
    %332 = vmatprep.subr.mxu0 0.0
    %333 = vmatpush1.msra.mxu0 0.0
    %334 = vmatprep.subr.mxu0 0.0
    %335 = vmatpush1.msra.mxu0 0.0
    %336 = vmatprep.subr.mxu0 0.0
    %337 = vmatpush1.msra.mxu0 0.0
    %338 = vmatprep.subr.mxu0 0.0
    %339 = vmatpush1.msra.mxu0 0.0
    %340 = vmatprep.subr.mxu0 0.0
    %341 = vmatpush1.msra.mxu0 0.0
    %342 = vmatprep.subr.mxu0 0.0
    %343 = vmatpush1.msra.mxu0 0.0
    %344 = vmatprep.subr.mxu0 0.0
    %345 = vmatpush1.msra.mxu0 0.0
    %346 = vmatprep.subr.mxu0 0.0
    %347 = vmatpush1.msra.mxu0 0.0
    %348 = vmatprep.subr.mxu0 0.0
    %349 = vmatpush1.msra.mxu0 0.0
    %350 = vmatprep.subr.mxu0 0.0
    %351 = vmatpush1.msra.mxu0 0.0
    %352 = vmatprep.subr.mxu0 0.0
    %353 = vmatpush1.msra.mxu0 0.0
    %354 = vmatprep.subr.mxu0 0.0
    %355 = vmatpush1.msra.mxu0 0.0
    %356 = vmatprep.subr.mxu0 0.0
    %357 = vmatpush1.msra.mxu0 0.0
    %358 = vmatprep.subr.mxu0 0.0
    %359 = vmatpush1.msra.mxu0 0.0
    %360 = vmatprep.subr.mxu0 0.0
    %361 = vmatpush1.msra.mxu0 0.0
    %362 = vmatprep.subr.mxu0 0.0
    %363 = vmatpush1.msra.mxu0 0.0
    %364 = vmatprep.subr.mxu0 0.0
    %365 = vmatpush1.msra.mxu0 0.0
    %366 = vmatprep.subr.mxu0 0.0
    %367 = vmatpush1.msra.mxu0 0.0
    %368 = vmatprep.subr.mxu0 0.0
    %369 = vmatpush1.msra.mxu0 0.0
    %370 = vmatprep.subr.mxu0 0.0
    %371 = vmatpush1.msra.mxu0 0.0
    %372 = vmatprep.subr.mxu0 0.0
    %373 = vmatpush1.msra.mxu0 0.0
    %374 = vmatprep.mubr.f32.mxu0 0.0
    %375 = vmatmul.mubr.f32.gmra.mrb[0].mxu0 %v308
    %v376 = vpop.f32.mrb[0].mxu0
    %v377 = vadd.f32 %v306, %v376
    %v378 = vpop.f32.mrb[0].mxu0
    %379 = vdwg.mxu0
    %v380 = vtanh.pop %v377
    %s381 = sld [smem:[#allocation3 + $0x3]]
    %s382 = scalar_lea.vmem [#allocation2], %s381
    %v383 = vld [vmem:[%s382] sm:$0x1]
    %s384 = sld [smem:[#allocation3 + $0x83]]
    %s385 = scalar_lea.vmem [#allocation2], %s384
    %v386 = vld [vmem:[%s385] sm:$0x1]
    %v388 = vrot.slane %v386, 7
    %v390 = vsel %vm210, %v383, %v388
    %v392 = vsel %vm59, %v380, 0
    %394 = vmatprep.subr.mxu0 0.0
    %395 = vmatpush1.msra.mxu0 %v197
    %396 = vmatprep.subr.mxu0 0.0
    %397 = vmatpush1.msra.mxu0 %v198
    %398 = vmatprep.subr.mxu0 0.0
    %399 = vmatpush1.msra.mxu0 %v199
    %400 = vmatprep.subr.mxu0 0.0
    %401 = vmatpush1.msra.mxu0 %v200
    %402 = vmatprep.subr.mxu0 0.0
    %403 = vmatpush1.msra.mxu0 0.0
    %404 = vmatprep.subr.mxu0 0.0
    %405 = vmatpush1.msra.mxu0 0.0
    %406 = vmatprep.subr.mxu0 0.0
    %407 = vmatpush1.msra.mxu0 0.0
    %408 = vmatprep.subr.mxu0 0.0
    %409 = vmatpush1.msra.mxu0 0.0
    %410 = vmatprep.subr.mxu0 0.0
    %411 = vmatpush1.msra.mxu0 0.0
    %412 = vmatprep.subr.mxu0 0.0
    %413 = vmatpush1.msra.mxu0 0.0
    %414 = vmatprep.subr.mxu0 0.0
    %415 = vmatpush1.msra.mxu0 0.0
    %416 = vmatprep.subr.mxu0 0.0
    %417 = vmatpush1.msra.mxu0 0.0
    %418 = vmatprep.subr.mxu0 0.0
    %419 = vmatpush1.msra.mxu0 0.0
    %420 = vmatprep.subr.mxu0 0.0
    %421 = vmatpush1.msra.mxu0 0.0
    %422 = vmatprep.subr.mxu0 0.0
    %423 = vmatpush1.msra.mxu0 0.0
    %424 = vmatprep.subr.mxu0 0.0
    %425 = vmatpush1.msra.mxu0 0.0
    %426 = vmatprep.subr.mxu0 0.0
    %427 = vmatpush1.msra.mxu0 0.0
    %428 = vmatprep.subr.mxu0 0.0
    %429 = vmatpush1.msra.mxu0 0.0
    %430 = vmatprep.subr.mxu0 0.0
    %431 = vmatpush1.msra.mxu0 0.0
    %432 = vmatprep.subr.mxu0 0.0
    %433 = vmatpush1.msra.mxu0 0.0
    %434 = vmatprep.subr.mxu0 0.0
    %435 = vmatpush1.msra.mxu0 0.0
    %436 = vmatprep.subr.mxu0 0.0
    %437 = vmatpush1.msra.mxu0 0.0
    %438 = vmatprep.subr.mxu0 0.0
    %439 = vmatpush1.msra.mxu0 0.0
    %440 = vmatprep.subr.mxu0 0.0
    %441 = vmatpush1.msra.mxu0 0.0
    %442 = vmatprep.subr.mxu0 0.0
    %443 = vmatpush1.msra.mxu0 0.0
    %444 = vmatprep.subr.mxu0 0.0
    %445 = vmatpush1.msra.mxu0 0.0
    %446 = vmatprep.subr.mxu0 0.0
    %447 = vmatpush1.msra.mxu0 0.0
    %448 = vmatprep.subr.mxu0 0.0
    %449 = vmatpush1.msra.mxu0 0.0
    %450 = vmatprep.subr.mxu0 0.0
    %451 = vmatpush1.msra.mxu0 0.0
    %452 = vmatprep.subr.mxu0 0.0
    %453 = vmatpush1.msra.mxu0 0.0
    %454 = vmatprep.subr.mxu0 0.0
    %455 = vmatpush1.msra.mxu0 0.0
    %456 = vmatprep.subr.mxu0 0.0
    %457 = vmatpush1.msra.mxu0 0.0
    %458 = vmatprep.mubr.f32.mxu0 0.0
    %459 = vmatmul.mubr.f32.gmra.mrb[0].mxu0 %v392
    %v460 = vpop.f32.mrb[0].mxu0
    %v461 = vadd.f32 %v390, %v460
    %v462 = vpop.f32.mrb[0].mxu0
    %463 = vdwg.mxu0
    %v464 = vtanh.pop %v461
    %s465 = sld [smem:[#allocation3 + $0x4]]
    %s466 = scalar_lea.vmem [#allocation2], %s465
    %v467 = vld [vmem:[%s466] sm:$0x1]
    %s468 = sld [smem:[#allocation3 + $0x84]]
    %s469 = scalar_lea.vmem [#allocation2], %s468
    %v470 = vld [vmem:[%s469] sm:$0x1]
    %v472 = vrot.slane %v470, 7
    %v474 = vsel %vm210, %v467, %v472
    %v476 = vsel %vm59, %v464, 0
    %478 = vmatprep.subr.mxu0 0.0
    %479 = vmatpush1.msra.mxu0 %v197
    %480 = vmatprep.subr.mxu0 0.0
    %481 = vmatpush1.msra.mxu0 %v198
    %482 = vmatprep.subr.mxu0 0.0
    %483 = vmatpush1.msra.mxu0 %v199
    %484 = vmatprep.subr.mxu0 0.0
    %485 = vmatpush1.msra.mxu0 %v200
    %486 = vmatprep.subr.mxu0 0.0
    %487 = vmatpush1.msra.mxu0 0.0
    %488 = vmatprep.subr.mxu0 0.0
    %489 = vmatpush1.msra.mxu0 0.0
    %490 = vmatprep.subr.mxu0 0.0
    %491 = vmatpush1.msra.mxu0 0.0
    %492 = vmatprep.subr.mxu0 0.0
    %493 = vmatpush1.msra.mxu0 0.0
    %494 = vmatprep.subr.mxu0 0.0
    %495 = vmatpush1.msra.mxu0 0.0
    %496 = vmatprep.subr.mxu0 0.0
    %497 = vmatpush1.msra.mxu0 0.0
    %498 = vmatprep.subr.mxu0 0.0
    %499 = vmatpush1.msra.mxu0 0.0
    %500 = vmatprep.subr.mxu0 0.0
    %501 = vmatpush1.msra.mxu0 0.0
    %502 = vmatprep.subr.mxu0 0.0
    %503 = vmatpush1.msra.mxu0 0.0
    %504 = vmatprep.subr.mxu0 0.0
    %505 = vmatpush1.msra.mxu0 0.0
    %506 = vmatprep.subr.mxu0 0.0
    %507 = vmatpush1.msra.mxu0 0.0
    %508 = vmatprep.subr.mxu0 0.0
    %509 = vmatpush1.msra.mxu0 0.0
    %510 = vmatprep.subr.mxu0 0.0
    %511 = vmatpush1.msra.mxu0 0.0
    %512 = vmatprep.subr.mxu0 0.0
    %513 = vmatpush1.msra.mxu0 0.0
    %514 = vmatprep.subr.mxu0 0.0
    %515 = vmatpush1.msra.mxu0 0.0
    %516 = vmatprep.subr.mxu0 0.0
    %517 = vmatpush1.msra.mxu0 0.0
    %518 = vmatprep.subr.mxu0 0.0
    %519 = vmatpush1.msra.mxu0 0.0
    %520 = vmatprep.subr.mxu0 0.0
    %521 = vmatpush1.msra.mxu0 0.0
    %522 = vmatprep.subr.mxu0 0.0
    %523 = vmatpush1.msra.mxu0 0.0
    %524 = vmatprep.subr.mxu0 0.0
    %525 = vmatpush1.msra.mxu0 0.0
    %526 = vmatprep.subr.mxu0 0.0
    %527 = vmatpush1.msra.mxu0 0.0
    %528 = vmatprep.subr.mxu0 0.0
    %529 = vmatpush1.msra.mxu0 0.0
    %530 = vmatprep.subr.mxu0 0.0
    %531 = vmatpush1.msra.mxu0 0.0
    %532 = vmatprep.subr.mxu0 0.0
    %533 = vmatpush1.msra.mxu0 0.0
    %534 = vmatprep.subr.mxu0 0.0
    %535 = vmatpush1.msra.mxu0 0.0
    %536 = vmatprep.subr.mxu0 0.0
    %537 = vmatpush1.msra.mxu0 0.0
    %538 = vmatprep.subr.mxu0 0.0
    %539 = vmatpush1.msra.mxu0 0.0
    %540 = vmatprep.subr.mxu0 0.0
    %541 = vmatpush1.msra.mxu0 0.0
    %542 = vmatprep.mubr.f32.mxu0 0.0
    %543 = vmatmul.mubr.f32.gmra.mrb[0].mxu0 %v476
    %v544 = vpop.f32.mrb[0].mxu0
    %v545 = vadd.f32 %v474, %v544
    %v546 = vpop.f32.mrb[0].mxu0
    %547 = vdwg.mxu0
    %v548 = vtanh.pop %v545
    %s549 = sld [smem:[#allocation3 + $0x5]]
    %s550 = scalar_lea.vmem [#allocation2], %s549
    %v551 = vld [vmem:[%s550] sm:$0x1]
    %s552 = sld [smem:[#allocation3 + $0x85]]
    %s553 = scalar_lea.vmem [#allocation2], %s552
    %v554 = vld [vmem:[%s553] sm:$0x1]
    %v556 = vrot.slane %v554, 7
    %v558 = vsel %vm210, %v551, %v556
    %v560 = vsel %vm59, %v548, 0
    %562 = vmatprep.subr.mxu0 0.0
    %563 = vmatpush1.msra.mxu0 %v197
    %564 = vmatprep.subr.mxu0 0.0
    %565 = vmatpush1.msra.mxu0 %v198
    %566 = vmatprep.subr.mxu0 0.0
    %567 = vmatpush1.msra.mxu0 %v199
    %568 = vmatprep.subr.mxu0 0.0
    %569 = vmatpush1.msra.mxu0 %v200
    %570 = vmatprep.subr.mxu0 0.0
    %571 = vmatpush1.msra.mxu0 0.0
    %572 = vmatprep.subr.mxu0 0.0
    %573 = vmatpush1.msra.mxu0 0.0
    %574 = vmatprep.subr.mxu0 0.0
    %575 = vmatpush1.msra.mxu0 0.0
    %576 = vmatprep.subr.mxu0 0.0
    %577 = vmatpush1.msra.mxu0 0.0
    %578 = vmatprep.subr.mxu0 0.0
    %579 = vmatpush1.msra.mxu0 0.0
    %580 = vmatprep.subr.mxu0 0.0
    %581 = vmatpush1.msra.mxu0 0.0
    %582 = vmatprep.subr.mxu0 0.0
    %583 = vmatpush1.msra.mxu0 0.0
    %584 = vmatprep.subr.mxu0 0.0
    %585 = vmatpush1.msra.mxu0 0.0
    %586 = vmatprep.subr.mxu0 0.0
    %587 = vmatpush1.msra.mxu0 0.0
    %588 = vmatprep.subr.mxu0 0.0
    %589 = vmatpush1.msra.mxu0 0.0
    %590 = vmatprep.subr.mxu0 0.0
    %591 = vmatpush1.msra.mxu0 0.0
    %592 = vmatprep.subr.mxu0 0.0
    %593 = vmatpush1.msra.mxu0 0.0
    %594 = vmatprep.subr.mxu0 0.0
    %595 = vmatpush1.msra.mxu0 0.0
    %596 = vmatprep.subr.mxu0 0.0
    %597 = vmatpush1.msra.mxu0 0.0
    %598 = vmatprep.subr.mxu0 0.0
    %599 = vmatpush1.msra.mxu0 0.0
    %600 = vmatprep.subr.mxu0 0.0
    %601 = vmatpush1.msra.mxu0 0.0
    %602 = vmatprep.subr.mxu0 0.0
    %603 = vmatpush1.msra.mxu0 0.0
    %604 = vmatprep.subr.mxu0 0.0
    %605 = vmatpush1.msra.mxu0 0.0
    %606 = vmatprep.subr.mxu0 0.0
    %607 = vmatpush1.msra.mxu0 0.0
    %608 = vmatprep.subr.mxu0 0.0
    %609 = vmatpush1.msra.mxu0 0.0
    %610 = vmatprep.subr.mxu0 0.0
    %611 = vmatpush1.msra.mxu0 0.0
    %612 = vmatprep.subr.mxu0 0.0
    %613 = vmatpush1.msra.mxu0 0.0
    %614 = vmatprep.subr.mxu0 0.0
    %615 = vmatpush1.msra.mxu0 0.0
    %616 = vmatprep.subr.mxu0 0.0
    %617 = vmatpush1.msra.mxu0 0.0
    %618 = vmatprep.subr.mxu0 0.0
    %619 = vmatpush1.msra.mxu0 0.0
    %620 = vmatprep.subr.mxu0 0.0
    %621 = vmatpush1.msra.mxu0 0.0
    %622 = vmatprep.subr.mxu0 0.0
    %623 = vmatpush1.msra.mxu0 0.0
    %624 = vmatprep.subr.mxu0 0.0
    %625 = vmatpush1.msra.mxu0 0.0
    %626 = vmatprep.mubr.f32.mxu0 0.0
    %627 = vmatmul.mubr.f32.gmra.mrb[0].mxu0 %v560
    %v628 = vpop.f32.mrb[0].mxu0
    %v629 = vadd.f32 %v558, %v628
    %v630 = vpop.f32.mrb[0].mxu0
    %631 = vdwg.mxu0
    %v632 = vtanh.pop %v629
    %s633 = sld [smem:[#allocation3 + $0x6]]
    %s634 = scalar_lea.vmem [#allocation2], %s633
    %v635 = vld [vmem:[%s634] sm:$0x1]
    %s636 = sld [smem:[#allocation3 + $0x86]]
    %s637 = scalar_lea.vmem [#allocation2], %s636
    %v638 = vld [vmem:[%s637] sm:$0x1]
    %v640 = vrot.slane %v638, 7
    %v642 = vsel %vm210, %v635, %v640
    %v644 = vsel %vm59, %v632, 0
    %646 = vmatprep.subr.mxu0 0.0
    %647 = vmatpush1.msra.mxu0 %v197
    %648 = vmatprep.subr.mxu0 0.0
    %649 = vmatpush1.msra.mxu0 %v198
    %650 = vmatprep.subr.mxu0 0.0
    %651 = vmatpush1.msra.mxu0 %v199
    %652 = vmatprep.subr.mxu0 0.0
    %653 = vmatpush1.msra.mxu0 %v200
    %654 = vmatprep.subr.mxu0 0.0
    %655 = vmatpush1.msra.mxu0 0.0
    %656 = vmatprep.subr.mxu0 0.0
    %657 = vmatpush1.msra.mxu0 0.0
    %658 = vmatprep.subr.mxu0 0.0
    %659 = vmatpush1.msra.mxu0 0.0
    %660 = vmatprep.subr.mxu0 0.0
    %661 = vmatpush1.msra.mxu0 0.0
    %662 = vmatprep.subr.mxu0 0.0
    %663 = vmatpush1.msra.mxu0 0.0
    %664 = vmatprep.subr.mxu0 0.0
    %665 = vmatpush1.msra.mxu0 0.0
    %666 = vmatprep.subr.mxu0 0.0
    %667 = vmatpush1.msra.mxu0 0.0
    %668 = vmatprep.subr.mxu0 0.0
    %669 = vmatpush1.msra.mxu0 0.0
    %670 = vmatprep.subr.mxu0 0.0
    %671 = vmatpush1.msra.mxu0 0.0
    %672 = vmatprep.subr.mxu0 0.0
    %673 = vmatpush1.msra.mxu0 0.0
    %674 = vmatprep.subr.mxu0 0.0
    %675 = vmatpush1.msra.mxu0 0.0
    %676 = vmatprep.subr.mxu0 0.0
    %677 = vmatpush1.msra.mxu0 0.0
    %678 = vmatprep.subr.mxu0 0.0
    %679 = vmatpush1.msra.mxu0 0.0
    %680 = vmatprep.subr.mxu0 0.0
    %681 = vmatpush1.msra.mxu0 0.0
    %682 = vmatprep.subr.mxu0 0.0
    %683 = vmatpush1.msra.mxu0 0.0
    %684 = vmatprep.subr.mxu0 0.0
    %685 = vmatpush1.msra.mxu0 0.0
    %686 = vmatprep.subr.mxu0 0.0
    %687 = vmatpush1.msra.mxu0 0.0
    %688 = vmatprep.subr.mxu0 0.0
    %689 = vmatpush1.msra.mxu0 0.0
    %690 = vmatprep.subr.mxu0 0.0
    %691 = vmatpush1.msra.mxu0 0.0
    %692 = vmatprep.subr.mxu0 0.0
    %693 = vmatpush1.msra.mxu0 0.0
    %694 = vmatprep.subr.mxu0 0.0
    %695 = vmatpush1.msra.mxu0 0.0
    %696 = vmatprep.subr.mxu0 0.0
    %697 = vmatpush1.msra.mxu0 0.0
    %698 = vmatprep.subr.mxu0 0.0
    %699 = vmatpush1.msra.mxu0 0.0
    %700 = vmatprep.subr.mxu0 0.0
    %701 = vmatpush1.msra.mxu0 0.0
    %702 = vmatprep.subr.mxu0 0.0
    %703 = vmatpush1.msra.mxu0 0.0
    %704 = vmatprep.subr.mxu0 0.0
    %705 = vmatpush1.msra.mxu0 0.0
    %706 = vmatprep.subr.mxu0 0.0
    %707 = vmatpush1.msra.mxu0 0.0
    %708 = vmatprep.subr.mxu0 0.0
    %709 = vmatpush1.msra.mxu0 0.0
    %710 = vmatprep.mubr.f32.mxu0 0.0
    %711 = vmatmul.mubr.f32.gmra.mrb[0].mxu0 %v644
    %v712 = vpop.f32.mrb[0].mxu0
    %v713 = vadd.f32 %v642, %v712
    %v714 = vpop.f32.mrb[0].mxu0
    %715 = vdwg.mxu0
    %v716 = vtanh.pop %v713
    %s717 = sld [smem:[#allocation3 + $0x7]]
    %s718 = scalar_lea.vmem [#allocation2], %s717
    %v719 = vld [vmem:[%s718] sm:$0x1]
    %s720 = sld [smem:[#allocation3 + $0x87]]
    %s721 = scalar_lea.vmem [#allocation2], %s720
    %v722 = vld [vmem:[%s721] sm:$0x1]
    %v724 = vrot.slane %v722, 7
    %v726 = vsel %vm210, %v719, %v724
    %v728 = vsel %vm59, %v716, 0
    %730 = vmatprep.subr.mxu0 0.0
    %731 = vmatpush1.msra.mxu0 %v197
    %732 = vmatprep.subr.mxu0 0.0
    %733 = vmatpush1.msra.mxu0 %v198
    %734 = vmatprep.subr.mxu0 0.0
    %735 = vmatpush1.msra.mxu0 %v199
    %736 = vmatprep.subr.mxu0 0.0
    %737 = vmatpush1.msra.mxu0 %v200
    %738 = vmatprep.subr.mxu0 0.0
    %739 = vmatpush1.msra.mxu0 0.0
    %740 = vmatprep.subr.mxu0 0.0
    %741 = vmatpush1.msra.mxu0 0.0
    %742 = vmatprep.subr.mxu0 0.0
    %743 = vmatpush1.msra.mxu0 0.0
    %744 = vmatprep.subr.mxu0 0.0
    %745 = vmatpush1.msra.mxu0 0.0
    %746 = vmatprep.subr.mxu0 0.0
    %747 = vmatpush1.msra.mxu0 0.0
    %748 = vmatprep.subr.mxu0 0.0
    %749 = vmatpush1.msra.mxu0 0.0
    %750 = vmatprep.subr.mxu0 0.0
    %751 = vmatpush1.msra.mxu0 0.0
    %752 = vmatprep.subr.mxu0 0.0
    %753 = vmatpush1.msra.mxu0 0.0
    %754 = vmatprep.subr.mxu0 0.0
    %755 = vmatpush1.msra.mxu0 0.0
    %756 = vmatprep.subr.mxu0 0.0
    %757 = vmatpush1.msra.mxu0 0.0
    %758 = vmatprep.subr.mxu0 0.0
    %759 = vmatpush1.msra.mxu0 0.0
    %760 = vmatprep.subr.mxu0 0.0
    %761 = vmatpush1.msra.mxu0 0.0
    %762 = vmatprep.subr.mxu0 0.0
    %763 = vmatpush1.msra.mxu0 0.0
    %764 = vmatprep.subr.mxu0 0.0
    %765 = vmatpush1.msra.mxu0 0.0
    %766 = vmatprep.subr.mxu0 0.0
    %767 = vmatpush1.msra.mxu0 0.0
    %768 = vmatprep.subr.mxu0 0.0
    %769 = vmatpush1.msra.mxu0 0.0
    %770 = vmatprep.subr.mxu0 0.0
    %771 = vmatpush1.msra.mxu0 0.0
    %772 = vmatprep.subr.mxu0 0.0
    %773 = vmatpush1.msra.mxu0 0.0
    %774 = vmatprep.subr.mxu0 0.0
    %775 = vmatpush1.msra.mxu0 0.0
    %776 = vmatprep.subr.mxu0 0.0
    %777 = vmatpush1.msra.mxu0 0.0
    %778 = vmatprep.subr.mxu0 0.0
    %779 = vmatpush1.msra.mxu0 0.0
    %780 = vmatprep.subr.mxu0 0.0
    %781 = vmatpush1.msra.mxu0 0.0
    %782 = vmatprep.subr.mxu0 0.0
    %783 = vmatpush1.msra.mxu0 0.0
    %784 = vmatprep.subr.mxu0 0.0
    %785 = vmatpush1.msra.mxu0 0.0
    %786 = vmatprep.subr.mxu0 0.0
    %787 = vmatpush1.msra.mxu0 0.0
    %788 = vmatprep.subr.mxu0 0.0
    %789 = vmatpush1.msra.mxu0 0.0
    %790 = vmatprep.subr.mxu0 0.0
    %791 = vmatpush1.msra.mxu0 0.0
    %792 = vmatprep.subr.mxu0 0.0
    %793 = vmatpush1.msra.mxu0 0.0
    %794 = vmatprep.mubr.f32.mxu0 0.0
    %795 = vmatmul.mubr.f32.gmra.mrb[0].mxu0 %v728
    %v796 = vpop.f32.mrb[0].mxu0
    %v797 = vadd.f32 %v726, %v796
    %v798 = vpop.f32.mrb[0].mxu0
    %799 = vdwg.mxu0
    %v800 = vtanh.pop %v797
    %v801 = vld [vmem:[%s5] sm:$0xff]
    %v802 = vld [vmem:[%s5 + $0x8] sm:$0xff]
    %v803 = vld [vmem:[%s5 + $0x10] sm:$0xff]
    %v804 = vld [vmem:[%s5 + $0x18] sm:$0xff]
    %v805 = vld [vmem:[%s6] sm:$0x1]
    %v807 = vlaneseq
    %v808 = vshrl.u32 %v807, 7
    %v809 = vsub.s32 0, %v808
    %v810 = vrot.slane %v805, %v809
    %v813 = vsel %vm59, %v800, 0
    %815 = vmatprep.subr.mxu0 0.0
    %816 = vmatpush1.msra.mxu0 %v801
    %817 = vmatprep.subr.mxu0 0.0
    %818 = vmatpush1.msra.mxu0 %v802
    %819 = vmatprep.subr.mxu0 0.0
    %820 = vmatpush1.msra.mxu0 %v803
    %821 = vmatprep.subr.mxu0 0.0
    %822 = vmatpush1.msra.mxu0 %v804
    %823 = vmatprep.subr.mxu0 0.0
    %824 = vmatpush1.msra.mxu0 0.0
    %825 = vmatprep.subr.mxu0 0.0
    %826 = vmatpush1.msra.mxu0 0.0
    %827 = vmatprep.subr.mxu0 0.0
    %828 = vmatpush1.msra.mxu0 0.0
    %829 = vmatprep.subr.mxu0 0.0
    %830 = vmatpush1.msra.mxu0 0.0
    %831 = vmatprep.subr.mxu0 0.0
    %832 = vmatpush1.msra.mxu0 0.0
    %833 = vmatprep.subr.mxu0 0.0
    %834 = vmatpush1.msra.mxu0 0.0
    %835 = vmatprep.subr.mxu0 0.0
    %836 = vmatpush1.msra.mxu0 0.0
    %837 = vmatprep.subr.mxu0 0.0
    %838 = vmatpush1.msra.mxu0 0.0
    %839 = vmatprep.subr.mxu0 0.0
    %840 = vmatpush1.msra.mxu0 0.0
    %841 = vmatprep.subr.mxu0 0.0
    %842 = vmatpush1.msra.mxu0 0.0
    %843 = vmatprep.subr.mxu0 0.0
    %844 = vmatpush1.msra.mxu0 0.0
    %845 = vmatprep.subr.mxu0 0.0
    %846 = vmatpush1.msra.mxu0 0.0
    %847 = vmatprep.subr.mxu0 0.0
    %848 = vmatpush1.msra.mxu0 0.0
    %849 = vmatprep.subr.mxu0 0.0
    %850 = vmatpush1.msra.mxu0 0.0
    %851 = vmatprep.subr.mxu0 0.0
    %852 = vmatpush1.msra.mxu0 0.0
    %853 = vmatprep.subr.mxu0 0.0
    %854 = vmatpush1.msra.mxu0 0.0
    %855 = vmatprep.subr.mxu0 0.0
    %856 = vmatpush1.msra.mxu0 0.0
    %857 = vmatprep.subr.mxu0 0.0
    %858 = vmatpush1.msra.mxu0 0.0
    %859 = vmatprep.subr.mxu0 0.0
    %860 = vmatpush1.msra.mxu0 0.0
    %861 = vmatprep.subr.mxu0 0.0
    %862 = vmatpush1.msra.mxu0 0.0
    %863 = vmatprep.subr.mxu0 0.0
    %864 = vmatpush1.msra.mxu0 0.0
    %865 = vmatprep.subr.mxu0 0.0
    %866 = vmatpush1.msra.mxu0 0.0
    %867 = vmatprep.subr.mxu0 0.0
    %868 = vmatpush1.msra.mxu0 0.0
    %869 = vmatprep.subr.mxu0 0.0
    %870 = vmatpush1.msra.mxu0 0.0
    %871 = vmatprep.subr.mxu0 0.0
    %872 = vmatpush1.msra.mxu0 0.0
    %873 = vmatprep.subr.mxu0 0.0
    %874 = vmatpush1.msra.mxu0 0.0
    %875 = vmatprep.subr.mxu0 0.0
    %876 = vmatpush1.msra.mxu0 0.0
    %877 = vmatprep.subr.mxu0 0.0
    %878 = vmatpush1.msra.mxu0 0.0
    %879 = vmatprep.mubr.f32.mxu0 0.0
    %880 = vmatmul.mubr.f32.gmra.mrb[0].mxu0 %v813
    %v881 = vpop.f32.mrb[0].mxu0
    %v882 = vadd.f32 %v810, %v881
    %v883 = vpop.f32.mrb[0].mxu0
    %884 = vdwg.mxu0
    %885 = vst [vmem:[#allocation6] sm:$0x3] %v882
    // Predicated region
    $region34: #{sentence_completion_forward.1} parent=1 // pred_check
      _
    $region35: #{sentence_completion_forward.1} parent=1 // pred_check_branch
      %887 = sbr.rel (0) target = $region37
    $region36: #{sentence_completion_forward.1} parent=1 // pred_region
      %s889 = ssub.s32 32, 32
      %890 = vsyncadd [#allocation4], %s889
      %s892 = sshll.u32 [#allocation6], 4
      %s893 = int_to_ptr.vmem [resolvable:$true] %s892
      %895 = dma.vmem_to_hbm [thread:$0]  %s893, 32, %s7, [#allocation4]
    $region37: #{sentence_completion_forward.1} parent=1 // pred_fallthru
      _
    // Predicated region
    $region38: #{sentence_completion_forward.1} parent=1 // pred_check
      _
    $region39: #{sentence_completion_forward.1} parent=1 // pred_check_branch
      %897 = sbr.rel (0) target = $region41
    $region40: #{sentence_completion_forward.1} parent=1 // pred_region
      %898 = dma.done [#allocation4], 32
    $region41: #{sentence_completion_forward.1} parent=1 // pred_fallthru
      _
    %899 = vsyncpa [#allocation4], 1
    %900 = vsyncpa [#allocation5], 1

</llo_original>
